<compile_context>
chip_gen: v5e
topology: v5e:2x2
jax: 0.10.0
libtpu: 0.0.40
codegen_flags: <defaults>
</compile_context>

<pallas_src>
import functools

import jax
import jax.numpy as jnp
from jax.experimental import pallas as pl
from jax.experimental.pallas import tpu as pltpu

LANE = 128
HIDDEN3_PAD = 128   # 64-wide hidden layer padded to a full lane width
MAX_TILE_B = 1024   # large tile amortizes per-grid-step overhead


def _round_up(n, m):
    return (n + m - 1) // m * m


def _cdiv(a, b):
    return (a + b - 1) // b


def _qnet_kernel(x_ref,
                 w1_ref, b1_ref,
                 w2_ref, b2_ref,
                 w3_ref, b3_ref,
                 w4_ref, b4_ref,
                 out_ref):
    # MXU matmuls always accumulate in fp32 (preferred_element_type).
    # cdt = MXU operand dtype (fp32 or bf16), taken from the weights.
    # edt = bias-add / ReLU dtype, taken from the biases (fp32 on v5e,
    #       bf16 recommended on v6e/v7x).
    cdt = w1_ref.dtype
    edt = b1_ref.dtype

    # Layer 1: (T, S) @ (S, 256) + (1, 256) -> ReLU
    h = jnp.dot(x_ref[...], w1_ref[...], preferred_element_type=jnp.float32)
    h = jnp.maximum(h.astype(edt) + b1_ref[...], 0.0)

    # Layer 2: (T, 256) @ (256, 128) + (1, 128) -> ReLU
    h = jnp.dot(h.astype(cdt), w2_ref[...], preferred_element_type=jnp.float32)
    h = jnp.maximum(h.astype(edt) + b2_ref[...], 0.0)

    # Layer 3 (padded to 128 wide): (T, 128) @ (128, 128) + (1, 128) -> ReLU
    h = jnp.dot(h.astype(cdt), w3_ref[...], preferred_element_type=jnp.float32)
    h = jnp.maximum(h.astype(edt) + b3_ref[...], 0.0)

    # Layer 4 head (lane-padded to 128 outputs, no activation)
    q = jnp.dot(h.astype(cdt), w4_ref[...], preferred_element_type=jnp.float32)
    out_ref[...] = (q.astype(edt) + b4_ref[...]).astype(out_ref.dtype)


@functools.partial(jax.jit,
                   static_argnames=("tile_b", "action_size", "out_dtype"))
def _qnet_forward(state, w1, b1, w2, b2, w3, b3, w4, b4, *,
                  tile_b, action_size, out_dtype):
    B, S = state.shape
    a_pad = w4.shape[1]
    b_pad = _round_up(max(B, tile_b), tile_b)

    x = state.astype(w1.dtype)
    if b_pad != B:
        x = jnp.pad(x, ((0, b_pad - B), (0, 0)))

    def _const(i):  # weights/biases: same block every grid step -> VMEM-resident
        return (0, 0)

    in_specs = [
        pl.BlockSpec((tile_b, S), lambda i: (i, 0)),   # state: batch-tiled
        pl.BlockSpec(w1.shape, _const),
        pl.BlockSpec(b1.shape, _const),
        pl.BlockSpec(w2.shape, _const),
        pl.BlockSpec(b2.shape, _const),
        pl.BlockSpec(w3.shape, _const),
        pl.BlockSpec(b3.shape, _const),
        pl.BlockSpec(w4.shape, _const),
        pl.BlockSpec(b4.shape, _const),
    ]
    out_spec = pl.BlockSpec((tile_b, a_pad), lambda i: (i, 0))

    out_padded = pl.pallas_call(
        _qnet_kernel,
        out_shape=jax.ShapeDtypeStruct((b_pad, a_pad), out_dtype),
        grid=(b_pad // tile_b,),
        in_specs=in_specs,
        out_specs=out_spec,
        compiler_params=pltpu.CompilerParams(
            dimension_semantics=("parallel",)),
    )(x, w1, b1, w2, b2, w3, b3, w4, b4)

    return out_padded[:B, :action_size]


def prepare_params(params, *, compute_dtype=jnp.bfloat16,
                   elementwise_dtype=jnp.float32):
    """One-time weight prep: zero-pad to lane-dense shapes and cast.

    params: dict with w1..w4 stored as (in, out) and b1..b4 as (1, out), fp32
            (i.e. torch's (out, in) weights pre-transposed).
    compute_dtype:     MXU operand dtype (bf16 recommended; fp32 accumulation
                       is always used inside the kernel).
    elementwise_dtype: bias-add/ReLU dtype (fp32 is safe everywhere; bf16
                       recommended on v6e/v7x which have a bf16 VPU).
    Zero-padded rows/cols contribute nothing and ReLU(0) = 0, so results are
    identical to the unpadded math (up to the chosen dtypes).
    """
    action_size = params["w4"].shape[1]
    a_pad = _round_up(max(action_size, 1), LANE)
    h3 = params["w3"].shape[1]

    prepared = {
        "w1": params["w1"].astype(compute_dtype),
        "b1": params["b1"].astype(elementwise_dtype),
        "w2": params["w2"].astype(compute_dtype),
        "b2": params["b2"].astype(elementwise_dtype),
        "w3": jnp.pad(params["w3"],
                      ((0, 0), (0, HIDDEN3_PAD - h3))).astype(compute_dtype),
        "b3": jnp.pad(params["b3"],
                      ((0, 0), (0, HIDDEN3_PAD - h3))).astype(elementwise_dtype),
        "w4": jnp.pad(params["w4"],
                      ((0, HIDDEN3_PAD - h3),
                       (0, a_pad - action_size))).astype(compute_dtype),
        "b4": jnp.pad(params["b4"],
                      ((0, 0), (0, a_pad - action_size))).astype(elementwise_dtype),
        "action_size": action_size,
    }
    return prepared


def qnetwork_forward(state, prepared, *, tile_b=None, out_dtype=None):
    """Fused QNetwork forward on TPU via Pallas.

    state:    (B, state_size)
    prepared: output of prepare_params() (padded / cast weights).
    tile_b:   batch tile (rows per grid step); default picks up to 1024 rows
              while guaranteeing >= 2 grid steps once B >= 16 (v7x megacore).
    out_dtype: output dtype; defaults to the compute dtype (bf16 output halves
               the dominant HBM store stream on the bf16 path).
    """
    B = state.shape[0]
    if tile_b is None:
        tile_b = min(MAX_TILE_B,
                     _round_up(_cdiv(B, 2), 8),
                     _round_up(B, 8))
        tile_b = max(tile_b, 8)
    if out_dtype is None:
        out_dtype = prepared["w1"].dtype
    return _qnet_forward(
        state,
        prepared["w1"], prepared["b1"],
        prepared["w2"], prepared["b2"],
        prepared["w3"], prepared["b3"],
        prepared["w4"], prepared["b4"],
        tile_b=int(tile_b),
        action_size=int(prepared["action_size"]),
        out_dtype=out_dtype,
    )


def init_params(key, state_size, action_size):
    """Deterministic parameter init (shapes match nn.Linear in QNetwork)."""
    sizes = [(state_size, 256), (256, 128), (128, 64), (64, action_size)]
    params = {}
    for i, (fan_in, fan_out) in enumerate(sizes, start=1):
        key, kw, kb = jax.random.split(key, 3)
        bound = 1.0 / jnp.sqrt(fan_in)
        # Stored as (in, out): torch's (out, in) weight transposed.
        params[f"w{i}"] = jax.random.uniform(
            kw, (fan_in, fan_out), jnp.float32, -bound, bound)
        params[f"b{i}"] = jax.random.uniform(
            kb, (1, fan_out), jnp.float32, -bound, bound)
    return params


def reference_forward(state, params):
    """Plain-JAX reference (unpadded fp32 math) for correctness checking."""
    h = jnp.maximum(state @ params["w1"] + params["b1"], 0.0)
    h = jnp.maximum(h @ params["w2"] + params["b2"], 0.0)
    h = jnp.maximum(h @ params["w3"] + params["b3"], 0.0)
    return h @ params["w4"] + params["b4"]


if __name__ == "__main__":
    key = jax.random.PRNGKey(0)
    state_size = 16   # e.g. traffic-signal state vector length
    action_size = 4   # e.g. number of signal phases

    key, kx, kp = jax.random.split(key, 3)
    params = init_params(kp, state_size, action_size)

    # Weight prep hoisted out of the forward (done once per parameter set).
    prepared_f32 = prepare_params(params, compute_dtype=jnp.float32,
                                  elementwise_dtype=jnp.float32)
    prepared_bf16 = prepare_params(params, compute_dtype=jnp.bfloat16,
                                   elementwise_dtype=jnp.bfloat16)

    # --- Check 1: small per-step inference batch, fp32, single grid step ---
    state_small = jax.random.normal(kx, (8, state_size), dtype=jnp.float32)
    q_small = jax.block_until_ready(qnetwork_forward(state_small, prepared_f32))
    ref_small = reference_forward(state_small, params)
    assert q_small.shape == (8, action_size)
    assert jnp.allclose(q_small, ref_small, atol=1e-4, rtol=1e-4)

    # --- Check 2: training-style batch (non-multiple of 8), fp32,
    #     exercises >= 2 parallel grid steps + batch padding slice ---
    key, kx2 = jax.random.split(key)
    state_big = jax.random.normal(kx2, (200, state_size), dtype=jnp.float32)
    q_big = jax.block_until_ready(qnetwork_forward(state_big, prepared_f32))
    ref_big = reference_forward(state_big, params)
    assert q_big.shape == (200, action_size)
    assert jnp.allclose(q_big, ref_big, atol=1e-4, rtol=1e-4)

    # --- Check 3: bf16 operands + bf16 elementwise + bf16 output
    #     (v6e/v7x fast path; fp32 accumulation inside the MXU) ---
    q_bf16 = jax.block_until_ready(qnetwork_forward(state_big, prepared_bf16))
    assert q_bf16.shape == (200, action_size)
    assert jnp.allclose(q_bf16.astype(jnp.float32), ref_big,
                        atol=1e-1, rtol=5e-2)

    # --- Check 4: replay-buffer-sized batch exercising the 1024-row tile
    #     (grid of 2 parallel steps -> both v7x TensorCores) ---
    key, kx3 = jax.random.split(key)
    state_large = jax.random.normal(kx3, (2048, state_size), dtype=jnp.float32)
    q_large = jax.block_until_ready(qnetwork_forward(state_large, prepared_bf16))
    ref_large = reference_forward(state_large, params)
    assert q_large.shape == (2048, action_size)
    assert jnp.allclose(q_large.astype(jnp.float32), ref_large,
                        atol=1e-1, rtol=5e-2)

    print("KERNEL_OK")
</pallas_src>

<mosaic_0001>
module attributes {stable_mosaic.version = 11 : i64} {
  func.func @_qnet_kernel(%arg0: i32, %arg1: memref<8x16xf32, #tpu.memory_space<vmem>>, %arg2: memref<16x256xf32, #tpu.memory_space<vmem>>, %arg3: memref<1x256xf32, #tpu.memory_space<vmem>>, %arg4: memref<256x128xf32, #tpu.memory_space<vmem>>, %arg5: memref<1x128xf32, #tpu.memory_space<vmem>>, %arg6: memref<128x128xf32, #tpu.memory_space<vmem>>, %arg7: memref<1x128xf32, #tpu.memory_space<vmem>>, %arg8: memref<128x128xf32, #tpu.memory_space<vmem>>, %arg9: memref<1x128xf32, #tpu.memory_space<vmem>>, %arg10: memref<8x128xf32, #tpu.memory_space<vmem>>) attributes {dimension_semantics = [#tpu.dimension_semantics<parallel>], iteration_bounds = array<i64: 1>, scalar_prefetch = 0 : i64, scratch_operands = 0 : i64, tpu.core_type = #tpu.core_type<tc>, window_params = [{transform_indices = @transform_0, window_bounds = array<i64: 8, 16>}, {pipeline_mode = #tpu.pipeline_mode<synchronous>, transform_indices = @transform_1, window_bounds = array<i64: 16, 256>}, {pipeline_mode = #tpu.pipeline_mode<synchronous>, transform_indices = @transform_2, window_bounds = array<i64: 1, 256>}, {pipeline_mode = #tpu.pipeline_mode<synchronous>, transform_indices = @transform_3, window_bounds = array<i64: 256, 128>}, {pipeline_mode = #tpu.pipeline_mode<synchronous>, transform_indices = @transform_4, window_bounds = array<i64: 1, 128>}, {pipeline_mode = #tpu.pipeline_mode<synchronous>, transform_indices = @transform_5, window_bounds = array<i64: 128, 128>}, {pipeline_mode = #tpu.pipeline_mode<synchronous>, transform_indices = @transform_6, window_bounds = array<i64: 1, 128>}, {pipeline_mode = #tpu.pipeline_mode<synchronous>, transform_indices = @transform_7, window_bounds = array<i64: 128, 128>}, {pipeline_mode = #tpu.pipeline_mode<synchronous>, transform_indices = @transform_8, window_bounds = array<i64: 1, 128>}, {transform_indices = @transform_9, window_bounds = array<i64: 8, 128>}]} {
    %c0 = arith.constant 0 : index
    %c0_0 = arith.constant 0 : index
    %0 = vector.load %arg1[%c0, %c0_0] : memref<8x16xf32, #tpu.memory_space<vmem>>, vector<8x16xf32>
    %c0_1 = arith.constant 0 : index
    %c0_2 = arith.constant 0 : index
    %1 = vector.load %arg2[%c0_1, %c0_2] : memref<16x256xf32, #tpu.memory_space<vmem>>, vector<16x256xf32>
    %cst = arith.constant dense<0.000000e+00> : vector<8x256xf32>
    %2 = tpu.matmul %0, %1, %cst {dimension_numbers = #tpu.dot_dimension_numbers<[1], [0], [0], [1], [0, 0, 1, 1], [], []>} : vector<8x16xf32>, vector<16x256xf32>, vector<8x256xf32> -> vector<8x256xf32>
    %c0_3 = arith.constant 0 : index
    %c0_4 = arith.constant 0 : index
    %3 = vector.load %arg3[%c0_3, %c0_4] : memref<1x256xf32, #tpu.memory_space<vmem>>, vector<1x256xf32>
    %4 = vector.broadcast %3 : vector<1x256xf32> to vector<8x256xf32>
    %5 = arith.addf %2, %4 : vector<8x256xf32>
    %cst_5 = arith.constant 0.000000e+00 : f32
    %6 = vector.broadcast %cst_5 : f32 to vector<8x256xf32>
    %7 = arith.maximumf %5, %6 : vector<8x256xf32>
    %c0_6 = arith.constant 0 : index
    %c0_7 = arith.constant 0 : index
    %8 = vector.load %arg4[%c0_6, %c0_7] : memref<256x128xf32, #tpu.memory_space<vmem>>, vector<256x128xf32>
    %cst_8 = arith.constant dense<0.000000e+00> : vector<8x128xf32>
    %9 = tpu.matmul %7, %8, %cst_8 {dimension_numbers = #tpu.dot_dimension_numbers<[1], [0], [0], [1], [0, 0, 1, 1], [], []>} : vector<8x256xf32>, vector<256x128xf32>, vector<8x128xf32> -> vector<8x128xf32>
    %c0_9 = arith.constant 0 : index
    %c0_10 = arith.constant 0 : index
    %10 = vector.load %arg5[%c0_9, %c0_10] : memref<1x128xf32, #tpu.memory_space<vmem>>, vector<1x128xf32>
    %11 = vector.broadcast %10 : vector<1x128xf32> to vector<8x128xf32>
    %12 = arith.addf %9, %11 : vector<8x128xf32>
    %cst_11 = arith.constant 0.000000e+00 : f32
    %13 = vector.broadcast %cst_11 : f32 to vector<8x128xf32>
    %14 = arith.maximumf %12, %13 : vector<8x128xf32>
    %c0_12 = arith.constant 0 : index
    %c0_13 = arith.constant 0 : index
    %15 = vector.load %arg6[%c0_12, %c0_13] : memref<128x128xf32, #tpu.memory_space<vmem>>, vector<128x128xf32>
    %cst_14 = arith.constant dense<0.000000e+00> : vector<8x128xf32>
    %16 = tpu.matmul %14, %15, %cst_14 {dimension_numbers = #tpu.dot_dimension_numbers<[1], [0], [0], [1], [0, 0, 1, 1], [], []>} : vector<8x128xf32>, vector<128x128xf32>, vector<8x128xf32> -> vector<8x128xf32>
    %c0_15 = arith.constant 0 : index
    %c0_16 = arith.constant 0 : index
    %17 = vector.load %arg7[%c0_15, %c0_16] : memref<1x128xf32, #tpu.memory_space<vmem>>, vector<1x128xf32>
    %18 = vector.broadcast %17 : vector<1x128xf32> to vector<8x128xf32>
    %19 = arith.addf %16, %18 : vector<8x128xf32>
    %cst_17 = arith.constant 0.000000e+00 : f32
    %20 = vector.broadcast %cst_17 : f32 to vector<8x128xf32>
    %21 = arith.maximumf %19, %20 : vector<8x128xf32>
    %c0_18 = arith.constant 0 : index
    %c0_19 = arith.constant 0 : index
    %22 = vector.load %arg8[%c0_18, %c0_19] : memref<128x128xf32, #tpu.memory_space<vmem>>, vector<128x128xf32>
    %cst_20 = arith.constant dense<0.000000e+00> : vector<8x128xf32>
    %23 = tpu.matmul %21, %22, %cst_20 {dimension_numbers = #tpu.dot_dimension_numbers<[1], [0], [0], [1], [0, 0, 1, 1], [], []>} : vector<8x128xf32>, vector<128x128xf32>, vector<8x128xf32> -> vector<8x128xf32>
    %c0_21 = arith.constant 0 : index
    %c0_22 = arith.constant 0 : index
    %24 = vector.load %arg9[%c0_21, %c0_22] : memref<1x128xf32, #tpu.memory_space<vmem>>, vector<1x128xf32>
    %25 = vector.broadcast %24 : vector<1x128xf32> to vector<8x128xf32>
    %26 = arith.addf %23, %25 : vector<8x128xf32>
    %c0_23 = arith.constant 0 : index
    %c0_24 = arith.constant 0 : index
    %27 = vector.load %arg10[%c0_23, %c0_24] : memref<8x128xf32, #tpu.memory_space<vmem>>, vector<8x128xf32>
    tpu.vector_store %arg10[%c0_23, %c0_24], %26 {strides = array<i32>} : memref<8x128xf32, #tpu.memory_space<vmem>>, vector<8x128xf32>,
    return
  }
  func.func @transform_0(%arg0: i32) -> (i32, i32) {
    %c0_i32 = arith.constant 0 : i32
    %c0_i32_0 = arith.constant 0 : i32
    return %arg0, %c0_i32 : i32, i32
  }
  func.func @transform_1(%arg0: i32) -> (i32, i32) {
    %c0_i32 = arith.constant 0 : i32
    %c0_i32_0 = arith.constant 0 : i32
    %c0_i32_1 = arith.constant 0 : i32
    return %c0_i32, %c0_i32_0 : i32, i32
  }
  func.func @transform_2(%arg0: i32) -> (i32, i32) {
    %c0_i32 = arith.constant 0 : i32
    %c0_i32_0 = arith.constant 0 : i32
    %c0_i32_1 = arith.constant 0 : i32
    return %c0_i32, %c0_i32_0 : i32, i32
  }
  func.func @transform_3(%arg0: i32) -> (i32, i32) {
    %c0_i32 = arith.constant 0 : i32
    %c0_i32_0 = arith.constant 0 : i32
    %c0_i32_1 = arith.constant 0 : i32
    return %c0_i32, %c0_i32_0 : i32, i32
  }
  func.func @transform_4(%arg0: i32) -> (i32, i32) {
    %c0_i32 = arith.constant 0 : i32
    %c0_i32_0 = arith.constant 0 : i32
    %c0_i32_1 = arith.constant 0 : i32
    return %c0_i32, %c0_i32_0 : i32, i32
  }
  func.func @transform_5(%arg0: i32) -> (i32, i32) {
    %c0_i32 = arith.constant 0 : i32
    %c0_i32_0 = arith.constant 0 : i32
    %c0_i32_1 = arith.constant 0 : i32
    return %c0_i32, %c0_i32_0 : i32, i32
  }
  func.func @transform_6(%arg0: i32) -> (i32, i32) {
    %c0_i32 = arith.constant 0 : i32
    %c0_i32_0 = arith.constant 0 : i32
    %c0_i32_1 = arith.constant 0 : i32
    return %c0_i32, %c0_i32_0 : i32, i32
  }
  func.func @transform_7(%arg0: i32) -> (i32, i32) {
    %c0_i32 = arith.constant 0 : i32
    %c0_i32_0 = arith.constant 0 : i32
    %c0_i32_1 = arith.constant 0 : i32
    return %c0_i32, %c0_i32_0 : i32, i32
  }
  func.func @transform_8(%arg0: i32) -> (i32, i32) {
    %c0_i32 = arith.constant 0 : i32
    %c0_i32_0 = arith.constant 0 : i32
    %c0_i32_1 = arith.constant 0 : i32
    return %c0_i32, %c0_i32_0 : i32, i32
  }
  func.func @transform_9(%arg0: i32) -> (i32, i32) {
    %c0_i32 = arith.constant 0 : i32
    %c0_i32_0 = arith.constant 0 : i32
    return %arg0, %c0_i32 : i32, i32
  }
}

</mosaic_0001>

<llo_original>
// kernel: _qnet_forward.1
$region0: #{_qnet_forward.1}
  #allocation0 [shape = 'u32[]', space=smem, size = 0x4, offset = 0x4, fixed_abs, tag = 'smem constant byte address 0x4 - core index']
  #allocation1 [shape = 'u32[72,128]{1,0:T(1,128)}', space=vmem, size = 0x9000, scoped, tag = 'internal scratch']
  %s0 = inlined_call_operand.hbm [shape: f32[8,16], index: 0, kind: input, shape index: {}]
  %s1 = inlined_call_operand.hbm [shape: f32[16,256], index: 1, kind: input, shape index: {}]
  %s2 = inlined_call_operand.hbm [shape: f32[1,256], index: 2, kind: input, shape index: {}]
  %s3 = inlined_call_operand.hbm [shape: f32[256,128], index: 3, kind: input, shape index: {}]
  %s4 = inlined_call_operand.vmem [shape: f32[1,128], index: 4, kind: input, shape index: {}]
  %s5 = inlined_call_operand.hbm [shape: f32[128,128], index: 5, kind: input, shape index: {}]
  %s6 = inlined_call_operand.vmem [shape: f32[1,128], index: 6, kind: input, shape index: {}]
  %s7 = inlined_call_operand.hbm [shape: f32[128,128], index: 7, kind: input, shape index: {}]
  %s8 = inlined_call_operand.vmem [shape: f32[1,128], index: 8, kind: input, shape index: {}]
  %s9 = inlined_call_operand.vmem [shape: f32[8,128], index: 9, kind: output, shape index: {}]
  %s10 = sld [smem:[#allocation0]]
  $region70: #{_qnet_forward.1} parent=0
    _
  %s12 = ssub.s32 1, %s10
  %s13 = scalar_select 0, %s12, %s10
  $region1: #{_qnet_forward.1} parent=0
    #allocation2 [shape = 'u8[4096]{0}', space=vmem, size = 0x1000, scoped, tag = 'input window, operand 0, single buffered']
    #allocation3 [shape = 's32[1]{0}', space=sflag, size = 0x4, scoped, tag = 'scoped memory for _qnet_forward.1']
    #allocation4 [shape = 'u8[16384]{0}', space=vmem, size = 0x4000, scoped, tag = 'input window, operand 1, single buffered']
    #allocation5 [shape = 's32[1]{0}', space=sflag, size = 0x4, scoped, tag = 'scoped memory for _qnet_forward.1']
    #allocation6 [shape = 'u8[1024]{0}', space=vmem, size = 0x400, scoped, tag = 'input window, operand 2, single buffered']
    #allocation7 [shape = 'u8[131072]{0}', space=vmem, size = 0x20000, scoped, tag = 'input window, operand 3, single buffered']
    #allocation8 [shape = 's32[1]{0}', space=sflag, size = 0x4, scoped, tag = 'scoped memory for _qnet_forward.1']
    #allocation9 [shape = 'u8[65536]{0}', space=vmem, size = 0x10000, scoped, tag = 'input window, operand 5, single buffered']
    #allocation10 [shape = 'u8[65536]{0}', space=vmem, size = 0x10000, scoped, tag = 'input window, operand 7, single buffered']
    #allocation11 [shape = 's32[1]{0}', space=sflag, size = 0x4, scoped, tag = 'scoped memory for _qnet_forward.1']
    %14 = vsyncpa [#allocation3], 0
    %15 = vsyncpa [#allocation5], 0
    %16 = vsyncpa [#allocation8], 0
    %17 = vsyncpa [#allocation11], 0
    // Predicated region
    $region2: #{_qnet_forward.1} parent=1 // pred_check
      _
    $region3: #{_qnet_forward.1} parent=1 // pred_check_branch
      %19 = sbr.rel (0) target = $region5
    $region4: #{_qnet_forward.1} parent=1 // pred_region
      %21 = vsyncadd [#allocation3], 0
      %s23 = sshll.u32 %s0, 4
      %s24 = int_to_ptr.hbm [resolvable:$true] %s23
      %s25 = sshll.u32 [#allocation2], 4
      %s26 = int_to_ptr.vmem [resolvable:$true] %s25
      %28 = dma.hbm_to_vmem [thread:$0]  %s24, 128, %s26, [#allocation3]
    $region5: #{_qnet_forward.1} parent=1 // pred_fallthru
      _
    // Predicated region
    $region6: #{_qnet_forward.1} parent=1 // pred_check
      _
    $region7: #{_qnet_forward.1} parent=1 // pred_check_branch
      %30 = sbr.rel (0) target = $region9
    $region8: #{_qnet_forward.1} parent=1 // pred_region
      %32 = vsyncadd [#allocation5], 0
      %s33 = sshll.u32 %s1, 4
      %s34 = int_to_ptr.hbm [resolvable:$true] %s33
      %s35 = sshll.u32 [#allocation4], 4
      %s36 = int_to_ptr.vmem [resolvable:$true] %s35
      %41 = dma.hbm_to_vmem [thread:$0]  %s34, 512, %s36, [#allocation5], 256, 256, 16
    $region9: #{_qnet_forward.1} parent=1 // pred_fallthru
      _
    // Predicated region
    $region10: #{_qnet_forward.1} parent=1 // pred_check
      _
    $region11: #{_qnet_forward.1} parent=1 // pred_check_branch
      %43 = sbr.rel (0) target = $region13
    $region12: #{_qnet_forward.1} parent=1 // pred_region
      %45 = vsyncadd [#allocation5], 0
      %s47 = sshll.u32 %s2, 4
      %s48 = int_to_ptr.hbm [resolvable:$true] %s47
      %s49 = sshll.u32 [#allocation6], 4
      %s50 = int_to_ptr.vmem [resolvable:$true] %s49
      %52 = dma.hbm_to_vmem [thread:$0]  %s48, 32, %s50, [#allocation5]
    $region13: #{_qnet_forward.1} parent=1 // pred_fallthru
      _
    // Predicated region
    $region14: #{_qnet_forward.1} parent=1 // pred_check
      _
    $region15: #{_qnet_forward.1} parent=1 // pred_check_branch
      %54 = sbr.rel (0) target = $region17
    $region16: #{_qnet_forward.1} parent=1 // pred_region
      %56 = vsyncadd [#allocation8], 0
      %s57 = sshll.u32 %s3, 4
      %s58 = int_to_ptr.hbm [resolvable:$true] %s57
      %s59 = sshll.u32 [#allocation7], 4
      %s60 = int_to_ptr.vmem [resolvable:$true] %s59
      %65 = dma.hbm_to_vmem [thread:$0]  %s58, 4096, %s60, [#allocation8], 128, 128, 8
    $region17: #{_qnet_forward.1} parent=1 // pred_fallthru
      _
    // Predicated region
    $region18: #{_qnet_forward.1} parent=1 // pred_check
      _
    $region19: #{_qnet_forward.1} parent=1 // pred_check_branch
      %67 = sbr.rel (0) target = $region21
    $region20: #{_qnet_forward.1} parent=1 // pred_region
      _
    $region21: #{_qnet_forward.1} parent=1 // pred_fallthru
      _
    // Predicated region
    $region22: #{_qnet_forward.1} parent=1 // pred_check
      _
    $region23: #{_qnet_forward.1} parent=1 // pred_check_branch
      %69 = sbr.rel (0) target = $region25
    $region24: #{_qnet_forward.1} parent=1 // pred_region
      %71 = vsyncadd [#allocation8], 0
      %s72 = sshll.u32 %s5, 4
      %s73 = int_to_ptr.hbm [resolvable:$true] %s72
      %s74 = sshll.u32 [#allocation9], 4
      %s75 = int_to_ptr.vmem [resolvable:$true] %s74
      %80 = dma.hbm_to_vmem [thread:$0]  %s73, 2048, %s75, [#allocation8], 128, 128, 8
    $region25: #{_qnet_forward.1} parent=1 // pred_fallthru
      _
    // Predicated region
    $region26: #{_qnet_forward.1} parent=1 // pred_check
      _
    $region27: #{_qnet_forward.1} parent=1 // pred_check_branch
      %82 = sbr.rel (0) target = $region29
    $region28: #{_qnet_forward.1} parent=1 // pred_region
      _
    $region29: #{_qnet_forward.1} parent=1 // pred_fallthru
      _
    // Predicated region
    $region30: #{_qnet_forward.1} parent=1 // pred_check
      _
    $region31: #{_qnet_forward.1} parent=1 // pred_check_branch
      %84 = sbr.rel (0) target = $region33
    $region32: #{_qnet_forward.1} parent=1 // pred_region
      %86 = vsyncadd [#allocation11], 0
      %s87 = sshll.u32 %s7, 4
      %s88 = int_to_ptr.hbm [resolvable:$true] %s87
      %s89 = sshll.u32 [#allocation10], 4
      %s90 = int_to_ptr.vmem [resolvable:$true] %s89
      %95 = dma.hbm_to_vmem [thread:$0]  %s88, 2048, %s90, [#allocation11], 128, 128, 8
    $region33: #{_qnet_forward.1} parent=1 // pred_fallthru
      _
    // Predicated region
    $region34: #{_qnet_forward.1} parent=1 // pred_check
      _
    $region35: #{_qnet_forward.1} parent=1 // pred_check_branch
      %97 = sbr.rel (0) target = $region37
    $region36: #{_qnet_forward.1} parent=1 // pred_region
      _
    $region37: #{_qnet_forward.1} parent=1 // pred_fallthru
      _
    // Predicated region
    $region38: #{_qnet_forward.1} parent=1 // pred_check
      _
    $region39: #{_qnet_forward.1} parent=1 // pred_check_branch
      %99 = sbr.rel (0) target = $region41
    $region40: #{_qnet_forward.1} parent=1 // pred_region
      %101 = dma.done [#allocation3], 128
    $region41: #{_qnet_forward.1} parent=1 // pred_fallthru
      _
    // Predicated region
    $region42: #{_qnet_forward.1} parent=1 // pred_check
      _
    $region43: #{_qnet_forward.1} parent=1 // pred_check_branch
      %103 = sbr.rel (0) target = $region45
    $region44: #{_qnet_forward.1} parent=1 // pred_region
      %105 = dma.done [#allocation5], 512
    $region45: #{_qnet_forward.1} parent=1 // pred_fallthru
      _
    // Predicated region
    $region46: #{_qnet_forward.1} parent=1 // pred_check
      _
    $region47: #{_qnet_forward.1} parent=1 // pred_check_branch
      %107 = sbr.rel (0) target = $region49
    $region48: #{_qnet_forward.1} parent=1 // pred_region
      %109 = dma.done [#allocation5], 32
    $region49: #{_qnet_forward.1} parent=1 // pred_fallthru
      _
    // Predicated region
    $region50: #{_qnet_forward.1} parent=1 // pred_check
      _
    $region51: #{_qnet_forward.1} parent=1 // pred_check_branch
      %111 = sbr.rel (0) target = $region53
    $region52: #{_qnet_forward.1} parent=1 // pred_region
      %113 = dma.done [#allocation8], 4096
    $region53: #{_qnet_forward.1} parent=1 // pred_fallthru
      _
    // Predicated region
    $region54: #{_qnet_forward.1} parent=1 // pred_check
      _
    $region55: #{_qnet_forward.1} parent=1 // pred_check_branch
      %115 = sbr.rel (0) target = $region57
    $region56: #{_qnet_forward.1} parent=1 // pred_region
      %117 = dma.done [#allocation8], 2048
    $region57: #{_qnet_forward.1} parent=1 // pred_fallthru
      _
    // Predicated region
    $region58: #{_qnet_forward.1} parent=1 // pred_check
      _
    $region59: #{_qnet_forward.1} parent=1 // pred_check_branch
      %119 = sbr.rel (0) target = $region61
    $region60: #{_qnet_forward.1} parent=1 // pred_region
      %121 = dma.done [#allocation11], 2048
    $region61: #{_qnet_forward.1} parent=1 // pred_fallthru
      _
    %v122 = vld [vmem:[#allocation2] sm:$0xff]
    %v123 = vld [vmem:[#allocation4] sm:$0xff]
    %v124 = vld [vmem:[#allocation4 + $0x8] sm:$0xff]
    %v125 = vld [vmem:[#allocation4 + $0x10] sm:$0xff]
    %v126 = vld [vmem:[#allocation4 + $0x18] sm:$0xff]
    %v127 = vld [vmem:[#allocation6] sm:$0x3]
    %v129 = vperm.slane %v127, 0
    %v130 = vperm.slane %v127, 1
    %vm133 = vcmask 130048
    %v135 = vsel %vm133, %v122, 0
    %137 = vmatpush.msra.mxu0 0.0
    %138 = vmatpush.msra.mxu0 0.0
    %139 = vmatpush.msra.mxu0 0.0
    %140 = vmatpush.msra.mxu0 0.0
    %141 = vmatpush.msra.mxu0 0.0
    %142 = vmatpush.msra.mxu0 0.0
    %143 = vmatpush.msra.mxu0 0.0
    %144 = vmatpush.msra.mxu0 0.0
    %145 = vmatpush.msra.mxu0 0.0
    %146 = vmatpush.msra.mxu0 0.0
    %147 = vmatpush.msra.mxu0 0.0
    %148 = vmatpush.msra.mxu0 0.0
    %149 = vmatpush.msra.mxu0 0.0
    %150 = vmatpush.msra.mxu0 0.0
    %151 = vmatpush.msra.mxu0 %v125
    %152 = vmatpush.msra.mxu0 %v123
    %153 = vmatmul.f32.gmra.mxu0 %v135
    %v154 = vpop.f32.mrf.mxu0
    %v155 = vadd.f32 %v129, %v154
    %156 = vdwg.mxu0
    %157 = vmatpush.msra.mxu0 0.0
    %158 = vmatpush.msra.mxu0 0.0
    %159 = vmatpush.msra.mxu0 0.0
    %160 = vmatpush.msra.mxu0 0.0
    %161 = vmatpush.msra.mxu0 0.0
    %162 = vmatpush.msra.mxu0 0.0
    %163 = vmatpush.msra.mxu0 0.0
    %164 = vmatpush.msra.mxu0 0.0
    %165 = vmatpush.msra.mxu0 0.0
    %166 = vmatpush.msra.mxu0 0.0
    %167 = vmatpush.msra.mxu0 0.0
    %168 = vmatpush.msra.mxu0 0.0
    %169 = vmatpush.msra.mxu0 0.0
    %170 = vmatpush.msra.mxu0 0.0
    %171 = vmatpush.msra.mxu0 %v126
    %172 = vmatpush.msra.mxu0 %v124
    %173 = vmatmul.f32.gmra.mxu0 %v135
    %v174 = vpop.f32.mrf.mxu0
    %v175 = vadd.f32 %v130, %v174
    %176 = vdwg.mxu0
    %v177 = vmax.f32 %v155, 0.0
    %v178 = vmax.f32 %v175, 0.0
    %v179 = vld [vmem:[#allocation7] sm:$0xff]
    %v180 = vld [vmem:[#allocation7 + $0x8] sm:$0xff]
    %v181 = vld [vmem:[#allocation7 + $0x10] sm:$0xff]
    %v182 = vld [vmem:[#allocation7 + $0x18] sm:$0xff]
    %v183 = vld [vmem:[#allocation7 + $0x20] sm:$0xff]
    %v184 = vld [vmem:[#allocation7 + $0x28] sm:$0xff]
    %v185 = vld [vmem:[#allocation7 + $0x30] sm:$0xff]
    %v186 = vld [vmem:[#allocation7 + $0x38] sm:$0xff]
    %v187 = vld [vmem:[#allocation7 + $0x40] sm:$0xff]
    %v188 = vld [vmem:[#allocation7 + $0x48] sm:$0xff]
    %v189 = vld [vmem:[#allocation7 + $0x50] sm:$0xff]
    %v190 = vld [vmem:[#allocation7 + $0x58] sm:$0xff]
    %v191 = vld [vmem:[#allocation7 + $0x60] sm:$0xff]
    %v192 = vld [vmem:[#allocation7 + $0x68] sm:$0xff]
    %v193 = vld [vmem:[#allocation7 + $0x70] sm:$0xff]
    %v194 = vld [vmem:[#allocation7 + $0x78] sm:$0xff]
    %v195 = vld [vmem:[#allocation7 + $0x80] sm:$0xff]
    %v196 = vld [vmem:[#allocation7 + $0x88] sm:$0xff]
    %v197 = vld [vmem:[#allocation7 + $0x90] sm:$0xff]
    %v198 = vld [vmem:[#allocation7 + $0x98] sm:$0xff]
    %v199 = vld [vmem:[#allocation7 + $0xa0] sm:$0xff]
    %v200 = vld [vmem:[#allocation7 + $0xa8] sm:$0xff]
    %v201 = vld [vmem:[#allocation7 + $0xb0] sm:$0xff]
    %v202 = vld [vmem:[#allocation7 + $0xb8] sm:$0xff]
    %v203 = vld [vmem:[#allocation7 + $0xc0] sm:$0xff]
    %v204 = vld [vmem:[#allocation7 + $0xc8] sm:$0xff]
    %v205 = vld [vmem:[#allocation7 + $0xd0] sm:$0xff]
    %v206 = vld [vmem:[#allocation7 + $0xd8] sm:$0xff]
    %v207 = vld [vmem:[#allocation7 + $0xe0] sm:$0xff]
    %v208 = vld [vmem:[#allocation7 + $0xe8] sm:$0xff]
    %v209 = vld [vmem:[#allocation7 + $0xf0] sm:$0xff]
    %v210 = vld [vmem:[#allocation7 + $0xf8] sm:$0xff]
    %v211 = vld [vmem:[%s4] sm:$0x1]
    %v213 = vperm.slane %v211, 0
    %215 = vmatpush.msra.mxu0 %v194
    %216 = vmatpush.msra.mxu0 %v193
    %217 = vmatpush.msra.mxu0 %v192
    %218 = vmatpush.msra.mxu0 %v191
    %219 = vmatpush.msra.mxu0 %v190
    %220 = vmatpush.msra.mxu0 %v189
    %221 = vmatpush.msra.mxu0 %v188
    %222 = vmatpush.msra.mxu0 %v187
    %223 = vmatpush.msra.mxu0 %v186
    %224 = vmatpush.msra.mxu0 %v185
    %225 = vmatpush.msra.mxu0 %v184
    %226 = vmatpush.msra.mxu0 %v183
    %227 = vmatpush.msra.mxu0 %v182
    %228 = vmatpush.msra.mxu0 %v181
    %229 = vmatpush.msra.mxu0 %v180
    %230 = vmatpush.msra.mxu0 %v179
    %231 = vmatmul.f32.gmra.mxu0 %v177
    %v232 = vpop.f32.mrf.mxu0
    %v233 = vadd.f32 %v213, %v232
    %234 = vdwg.mxu0
    %235 = vmatpush.msra.mxu0 %v210
    %236 = vmatpush.msra.mxu0 %v209
    %237 = vmatpush.msra.mxu0 %v208
    %238 = vmatpush.msra.mxu0 %v207
    %239 = vmatpush.msra.mxu0 %v206
    %240 = vmatpush.msra.mxu0 %v205
    %241 = vmatpush.msra.mxu0 %v204
    %242 = vmatpush.msra.mxu0 %v203
    %243 = vmatpush.msra.mxu0 %v202
    %244 = vmatpush.msra.mxu0 %v201
    %245 = vmatpush.msra.mxu0 %v200
    %246 = vmatpush.msra.mxu0 %v199
    %247 = vmatpush.msra.mxu0 %v198
    %248 = vmatpush.msra.mxu0 %v197
    %249 = vmatpush.msra.mxu0 %v196
    %250 = vmatpush.msra.mxu0 %v195
    %251 = vmatmul.f32.gmra.mxu0 %v178
    %v252 = vpop.f32.mrf.mxu0
    %v253 = vadd.f32 %v233, %v252
    %254 = vdwg.mxu0
    %v255 = vmax.f32 %v253, 0.0
    %v256 = vld [vmem:[#allocation9] sm:$0xff]
    %v257 = vld [vmem:[#allocation9 + $0x8] sm:$0xff]
    %v258 = vld [vmem:[#allocation9 + $0x10] sm:$0xff]
    %v259 = vld [vmem:[#allocation9 + $0x18] sm:$0xff]
    %v260 = vld [vmem:[#allocation9 + $0x20] sm:$0xff]
    %v261 = vld [vmem:[#allocation9 + $0x28] sm:$0xff]
    %v262 = vld [vmem:[#allocation9 + $0x30] sm:$0xff]
    %v263 = vld [vmem:[#allocation9 + $0x38] sm:$0xff]
    %v264 = vld [vmem:[#allocation9 + $0x40] sm:$0xff]
    %v265 = vld [vmem:[#allocation9 + $0x48] sm:$0xff]
    %v266 = vld [vmem:[#allocation9 + $0x50] sm:$0xff]
    %v267 = vld [vmem:[#allocation9 + $0x58] sm:$0xff]
    %v268 = vld [vmem:[#allocation9 + $0x60] sm:$0xff]
    %v269 = vld [vmem:[#allocation9 + $0x68] sm:$0xff]
    %v270 = vld [vmem:[#allocation9 + $0x70] sm:$0xff]
    %v271 = vld [vmem:[#allocation9 + $0x78] sm:$0xff]
    %v272 = vld [vmem:[%s6] sm:$0x1]
    %v274 = vperm.slane %v272, 0
    %276 = vmatpush.msra.mxu0 %v271
    %277 = vmatpush.msra.mxu0 %v270
    %278 = vmatpush.msra.mxu0 %v269
    %279 = vmatpush.msra.mxu0 %v268
    %280 = vmatpush.msra.mxu0 %v267
    %281 = vmatpush.msra.mxu0 %v266
    %282 = vmatpush.msra.mxu0 %v265
    %283 = vmatpush.msra.mxu0 %v264
    %284 = vmatpush.msra.mxu0 %v263
    %285 = vmatpush.msra.mxu0 %v262
    %286 = vmatpush.msra.mxu0 %v261
    %287 = vmatpush.msra.mxu0 %v260
    %288 = vmatpush.msra.mxu0 %v259
    %289 = vmatpush.msra.mxu0 %v258
    %290 = vmatpush.msra.mxu0 %v257
    %291 = vmatpush.msra.mxu0 %v256
    %292 = vmatmul.f32.gmra.mxu0 %v255
    %v293 = vpop.f32.mrf.mxu0
    %v294 = vadd.f32 %v274, %v293
    %295 = vdwg.mxu0
    %v296 = vmax.f32 %v294, 0.0
    %v297 = vld [vmem:[#allocation10] sm:$0xff]
    %v298 = vld [vmem:[#allocation10 + $0x8] sm:$0xff]
    %v299 = vld [vmem:[#allocation10 + $0x10] sm:$0xff]
    %v300 = vld [vmem:[#allocation10 + $0x18] sm:$0xff]
    %v301 = vld [vmem:[#allocation10 + $0x20] sm:$0xff]
    %v302 = vld [vmem:[#allocation10 + $0x28] sm:$0xff]
    %v303 = vld [vmem:[#allocation10 + $0x30] sm:$0xff]
    %v304 = vld [vmem:[#allocation10 + $0x38] sm:$0xff]
    %v305 = vld [vmem:[#allocation10 + $0x40] sm:$0xff]
    %v306 = vld [vmem:[#allocation10 + $0x48] sm:$0xff]
    %v307 = vld [vmem:[#allocation10 + $0x50] sm:$0xff]
    %v308 = vld [vmem:[#allocation10 + $0x58] sm:$0xff]
    %v309 = vld [vmem:[#allocation10 + $0x60] sm:$0xff]
    %v310 = vld [vmem:[#allocation10 + $0x68] sm:$0xff]
    %v311 = vld [vmem:[#allocation10 + $0x70] sm:$0xff]
    %v312 = vld [vmem:[#allocation10 + $0x78] sm:$0xff]
    %v313 = vld [vmem:[%s8] sm:$0x1]
    %v315 = vperm.slane %v313, 0
    %317 = vmatpush.msra.mxu0 %v312
    %318 = vmatpush.msra.mxu0 %v311
    %319 = vmatpush.msra.mxu0 %v310
    %320 = vmatpush.msra.mxu0 %v309
    %321 = vmatpush.msra.mxu0 %v308
    %322 = vmatpush.msra.mxu0 %v307
    %323 = vmatpush.msra.mxu0 %v306
    %324 = vmatpush.msra.mxu0 %v305
    %325 = vmatpush.msra.mxu0 %v304
    %326 = vmatpush.msra.mxu0 %v303
    %327 = vmatpush.msra.mxu0 %v302
    %328 = vmatpush.msra.mxu0 %v301
    %329 = vmatpush.msra.mxu0 %v300
    %330 = vmatpush.msra.mxu0 %v299
    %331 = vmatpush.msra.mxu0 %v298
    %332 = vmatpush.msra.mxu0 %v297
    %333 = vmatmul.f32.gmra.mxu0 %v296
    %v334 = vpop.f32.mrf.mxu0
    %v335 = vadd.f32 %v315, %v334
    %336 = vdwg.mxu0
    %337 = vst [vmem:[%s9] sm:$0xff] %v335
    // Predicated region
    $region62: #{_qnet_forward.1} parent=1 // pred_check
      _
    $region63: #{_qnet_forward.1} parent=1 // pred_check_branch
      %339 = sbr.rel (0) target = $region65
    $region64: #{_qnet_forward.1} parent=1 // pred_region
      _
    $region65: #{_qnet_forward.1} parent=1 // pred_fallthru
      _
    // Predicated region
    $region66: #{_qnet_forward.1} parent=1 // pred_check
      _
    $region67: #{_qnet_forward.1} parent=1 // pred_check_branch
      %341 = sbr.rel (0) target = $region69
    $region68: #{_qnet_forward.1} parent=1 // pred_region
      _
    $region69: #{_qnet_forward.1} parent=1 // pred_fallthru
      _
    %342 = vsyncpa [#allocation3], 1
    %343 = vsyncpa [#allocation5], 1
    %344 = vsyncpa [#allocation8], 1
    %345 = vsyncpa [#allocation11], 1

</llo_original>
